<compile_context>
chip_gen: v7x
topology: tpu7x:2x2x1
jax: 0.10.0
libtpu: 0.0.40
codegen_flags: <defaults>
</compile_context>

<pallas_src>
import jax
import jax.numpy as jnp
from jax.experimental import pallas as pl
from jax.experimental.pallas import tpu as pltpu

_LANES = 128          # vreg lane width
_MAX_TILE_ROWS = 2048 # 1 MiB/plane/buffer; <=10 MiB double-buffered -> fits v5e VMEM


def _antoine_kernel_scalar_t(t_ref, x_ref, o_ref):
    # t_ref: (1, 1) f32 scalar in SMEM.  x_ref: (3, tile_rows, 128) = [A; B; C].
    t = t_ref[0, 0]
    o_ref[...] = x_ref[0] - x_ref[1] / (t + x_ref[2])


def _antoine_kernel_vec_t(x_ref, o_ref):
    # x_ref: (4, tile_rows, 128) = [A; B; C; T].
    o_ref[...] = x_ref[0] - x_ref[1] / (x_ref[3] + x_ref[2])


def antoine_equation_layer(x_in, temperature, *, min_pallas_batch=32768):
    """Antoine equation layer.

    x_in: (batch, 3) with columns [A, B, C].
    temperature: scalar or (batch,) array.
    Returns log_P of shape (batch,) in x_in's dtype.
    """
    batch = x_in.shape[0]
    out_dtype = x_in.dtype

    x = x_in.astype(jnp.float32)
    t = jnp.asarray(temperature, jnp.float32)
    scalar_t = (t.ndim == 0) or (t.size == 1)

    # Small-batch fallback: a single fused XLA elementwise pass beats padding to a
    # full vreg tile and paying the pallas_call launch cost by 10-100x.
    if batch < min_pallas_batch:
        log_p = x[:, 0] - x[:, 1] / (t + x[:, 2])
        return log_p.astype(out_dtype)

    # ---- Balanced, lane-dense tiling -------------------------------------------
    rows = -(-batch // _LANES)                 # rows of 128 lanes
    rows8 = ((rows + 7) // 8) * 8              # f32 sublane multiple
    n_tiles = -(-rows8 // _MAX_TILE_ROWS)
    if n_tiles > 1 and (n_tiles % 2):
        n_tiles += 1                           # even >=2-step grid for v7x megacore
    tile_rows = ((-(-rows8 // n_tiles) + 7) // 8) * 8
    padded_rows = n_tiles * tile_rows
    total = padded_rows * _LANES

    # ---- One stacked input slab (single transpose [+concat] [+pad]) ------------
    planes = x.T                                           # (3, batch)
    if not scalar_t:
        planes = jnp.concatenate([planes, t.reshape(1, -1)], axis=0)  # (4, batch)
    if total != batch:
        # Pad with 1.0 so padded lanes never hit (T + C) == 0 (see header note).
        planes = jnp.pad(planes, ((0, 0), (0, total - batch)), constant_values=1.0)
    n_planes = planes.shape[0]
    stacked = planes.reshape(n_planes, padded_rows, _LANES)

    # ---- pallas_call ------------------------------------------------------------
    x_block = pl.BlockSpec((n_planes, tile_rows, _LANES), lambda i: (0, i, 0))
    o_block = pl.BlockSpec((tile_rows, _LANES), lambda i: (i, 0))
    params = pltpu.CompilerParams(dimension_semantics=("parallel",))
    out_shape = jax.ShapeDtypeStruct((padded_rows, _LANES), jnp.float32)
    cost = pl.CostEstimate(
        flops=3 * total,
        transcendentals=0,
        bytes_accessed=(n_planes + 1) * 4 * total,
    )

    if scalar_t:
        out = pl.pallas_call(
            _antoine_kernel_scalar_t,
            out_shape=out_shape,
            grid=(n_tiles,),
            in_specs=[
                pl.BlockSpec(memory_space=pltpu.MemorySpace.SMEM),  # T scalar
                x_block,
            ],
            out_specs=o_block,
            compiler_params=params,
            cost_estimate=cost,
        )(t.reshape(1, 1), stacked)
    else:
        out = pl.pallas_call(
            _antoine_kernel_vec_t,
            out_shape=out_shape,
            grid=(n_tiles,),
            in_specs=[x_block],
            out_specs=o_block,
            compiler_params=params,
            cost_estimate=cost,
        )(stacked)

    flat = out.reshape(-1)          # free view
    if total != batch:
        flat = flat[:batch]         # only for unaligned batches
    return flat.astype(out_dtype)


def _reference(x_in, temperature):
    return x_in[:, 0] - x_in[:, 1] / (temperature + x_in[:, 2])


def _make_inputs(key, batch):
    kA, kB, kC, kT = jax.random.split(key, 4)
    # Antoine-like coefficients: A ~ O(10), B ~ O(1000), C ~ O(100)
    A = jax.random.uniform(kA, (batch,), jnp.float32, 3.0, 9.0)
    B = jax.random.uniform(kB, (batch,), jnp.float32, 500.0, 2000.0)
    C = jax.random.uniform(kC, (batch,), jnp.float32, -60.0, -20.0)
    T = jax.random.uniform(kT, (batch,), jnp.float32, 280.0, 400.0)
    return jnp.stack([A, B, C], axis=1), T


if __name__ == "__main__":
    # 1) Tiny batch: exercises the small-batch jnp fallback (module semantics).
    x_small, t_small = _make_inputs(jax.random.PRNGKey(0), batch=8)
    out_small = jax.block_until_ready(antoine_equation_layer(x_small, t_small))
    assert out_small.shape == (8,)
    assert jnp.allclose(out_small, _reference(x_small, t_small), rtol=1e-6, atol=1e-6)

    # 2) Pallas path, forced at small shapes: aligned (256) and unaligned (300)
    #    batches, per-sample T (stacked (4,rows,128)) and scalar T (SMEM).
    for batch in (256, 300):
        x_in, temperature = _make_inputs(jax.random.PRNGKey(batch), batch)

        out_vec = jax.block_until_ready(
            antoine_equation_layer(x_in, temperature, min_pallas_batch=0))
        assert out_vec.shape == (batch,)
        assert jnp.allclose(out_vec, _reference(x_in, temperature),
                            rtol=1e-6, atol=1e-6)

        t_scalar = jnp.float32(350.0)
        out_sca = jax.block_until_ready(
            antoine_equation_layer(x_in, t_scalar, min_pallas_batch=0))
        assert out_sca.shape == (batch,)
        assert jnp.allclose(out_sca, _reference(x_in, t_scalar),
                            rtol=1e-6, atol=1e-6)

    print("KERNEL_OK")
</pallas_src>

<mosaic_0001>
module attributes {stable_mosaic.version = 11 : i64} {
  func.func @_antoine_kernel_vec_t(%arg0: i32, %arg1: memref<4x8x128xf32, #tpu.memory_space<vmem>>, %arg2: memref<8x128xf32, #tpu.memory_space<vmem>>) attributes {dimension_semantics = [#tpu.dimension_semantics<parallel>], iteration_bounds = array<i64: 1>, scalar_prefetch = 0 : i64, scratch_operands = 0 : i64, tpu.core_type = #tpu.core_type<tc>, window_params = [{transform_indices = @transform_0, window_bounds = array<i64: 4, 8, 128>}, {transform_indices = @transform_1, window_bounds = array<i64: 8, 128>}]} {
    %c0 = arith.constant 0 : index
    %c0_0 = arith.constant 0 : index
    %c0_1 = arith.constant 0 : index
    %0 = vector.load %arg1[%c0, %c0_0, %c0_1] : memref<4x8x128xf32, #tpu.memory_space<vmem>>, vector<1x8x128xf32>
    %1 = vector.shape_cast %0 : vector<1x8x128xf32> to vector<8x128xf32>
    %c1 = arith.constant 1 : index
    %c0_2 = arith.constant 0 : index
    %c0_3 = arith.constant 0 : index
    %2 = vector.load %arg1[%c1, %c0_2, %c0_3] : memref<4x8x128xf32, #tpu.memory_space<vmem>>, vector<1x8x128xf32>
    %3 = vector.shape_cast %2 : vector<1x8x128xf32> to vector<8x128xf32>
    %c3 = arith.constant 3 : index
    %c0_4 = arith.constant 0 : index
    %c0_5 = arith.constant 0 : index
    %4 = vector.load %arg1[%c3, %c0_4, %c0_5] : memref<4x8x128xf32, #tpu.memory_space<vmem>>, vector<1x8x128xf32>
    %5 = vector.shape_cast %4 : vector<1x8x128xf32> to vector<8x128xf32>
    %c2 = arith.constant 2 : index
    %c0_6 = arith.constant 0 : index
    %c0_7 = arith.constant 0 : index
    %6 = vector.load %arg1[%c2, %c0_6, %c0_7] : memref<4x8x128xf32, #tpu.memory_space<vmem>>, vector<1x8x128xf32>
    %7 = vector.shape_cast %6 : vector<1x8x128xf32> to vector<8x128xf32>
    %8 = arith.addf %5, %7 : vector<8x128xf32>
    %9 = arith.divf %3, %8 : vector<8x128xf32>
    %10 = arith.subf %1, %9 : vector<8x128xf32>
    %c0_8 = arith.constant 0 : index
    %c0_9 = arith.constant 0 : index
    %11 = vector.load %arg2[%c0_8, %c0_9] : memref<8x128xf32, #tpu.memory_space<vmem>>, vector<8x128xf32>
    tpu.vector_store %arg2[%c0_8, %c0_9], %10 {strides = array<i32>} : memref<8x128xf32, #tpu.memory_space<vmem>>, vector<8x128xf32>,
    return
  }
  func.func @transform_0(%arg0: i32) -> (i32, i32, i32) {
    %c0_i32 = arith.constant 0 : i32
    %c0_i32_0 = arith.constant 0 : i32
    %c0_i32_1 = arith.constant 0 : i32
    return %c0_i32, %arg0, %c0_i32_0 : i32, i32, i32
  }
  func.func @transform_1(%arg0: i32) -> (i32, i32) {
    %c0_i32 = arith.constant 0 : i32
    %c0_i32_0 = arith.constant 0 : i32
    return %arg0, %c0_i32 : i32, i32
  }
}

</mosaic_0001>

<llo_original>
// kernel: tpu_custom_call.1
$region0: #{tpu_custom_call.1}
  #allocation0 [shape = 'u32[]', space=smem, size = 0x4, offset = 0x4, fixed_abs, tag = 'smem constant byte address 0x4 - core index']
  #allocation1 [shape = 'u32[144,128]{1,0:T(1,128)}', space=vmem, size = 0x12000, scoped, tag = 'internal scratch']
  %s0 = inlined_call_operand.hbm [shape: f32[4,8,128], index: 0, kind: input, shape index: {}]
  %s1 = inlined_call_operand.hbm [shape: f32[8,128], index: 1, kind: output, shape index: {}]
  %s2 = sld [smem:[#allocation0]]
  $region18: #{tpu_custom_call.1} parent=0
    _
  %s4 = ssub.s32 1, %s2
  %s5 = scalar_select 0, %s4, %s2
  $region1: #{tpu_custom_call.1} parent=0
    #allocation2 [shape = 'u8[16384]{0}', space=vmem, size = 0x4000, scoped, tag = 'input window, operand 0, single buffered']
    #allocation3 [shape = 's32[1]{0}', space=sflag, size = 0x4, scoped, tag = 'scoped memory for tpu_custom_call.1']
    #allocation4 [shape = 's32[1]{0}', space=sflag, size = 0x4, scoped, tag = 'scoped memory for tpu_custom_call.1']
    #allocation5 [shape = 'u8[4096]{0}', space=vmem, size = 0x1000, scoped, tag = 'output window, operand 0, single buffered']
    %6 = vsyncpa [#allocation3], 0
    %7 = vsyncpa [#allocation4], 0
    // Predicated region
    $region2: #{tpu_custom_call.1} parent=1 // pred_check
      _
    $region3: #{tpu_custom_call.1} parent=1 // pred_check_branch
      %9 = sbr.rel (0) target = $region5
    $region4: #{tpu_custom_call.1} parent=1 // pred_region
      %s11 = ssub.s32 512, 512
      %12 = vsyncadd [#allocation3], %s11
      %s13 = sshll.u32 [#allocation2], 4
      %s14 = int_to_ptr.vmem [resolvable:$true] %s13
      %19 = dma.hbm_to_vmem [thread:$0]  %s0, 512, %s14, [#allocation3], 128, 128, 8
    $region5: #{tpu_custom_call.1} parent=1 // pred_fallthru
      _
    // Predicated region
    $region6: #{tpu_custom_call.1} parent=1 // pred_check
      _
    $region7: #{tpu_custom_call.1} parent=1 // pred_check_branch
      %21 = sbr.rel (0) target = $region9
    $region8: #{tpu_custom_call.1} parent=1 // pred_region
      %22 = dma.done [#allocation3], 512
    $region9: #{tpu_custom_call.1} parent=1 // pred_fallthru
      _
    %v23 = vld [vmem:[#allocation2] sm:$0xff]
    %s24 = scalar_lea.vmem [#allocation2], 8
    %v25 = vld [vmem:[%s24] sm:$0xff]
    %s26 = scalar_lea.vmem [#allocation2], 24
    %v27 = vld [vmem:[%s26] sm:$0xff]
    %s28 = scalar_lea.vmem [#allocation2], 16
    %v29 = vld [vmem:[%s28] sm:$0xff]
    %v30 = vadd.f32 %v27, %v29
    %v31 = vrcp.pop %v30
    %v32 = vmul.f32 %v25, %v31
    %v33 = vsub.f32 %v23, %v32
    %34 = vst [vmem:[#allocation5] sm:$0xff] %v33
    // Predicated region
    $region10: #{tpu_custom_call.1} parent=1 // pred_check
      _
    $region11: #{tpu_custom_call.1} parent=1 // pred_check_branch
      %36 = sbr.rel (0) target = $region13
    $region12: #{tpu_custom_call.1} parent=1 // pred_region
      %s38 = ssub.s32 128, 128
      %39 = vsyncadd [#allocation4], %s38
      %s41 = sshll.u32 [#allocation5], 4
      %s42 = int_to_ptr.vmem [resolvable:$true] %s41
      %44 = dma.vmem_to_hbm [thread:$0]  %s42, 128, %s1, [#allocation4]
    $region13: #{tpu_custom_call.1} parent=1 // pred_fallthru
      _
    // Predicated region
    $region14: #{tpu_custom_call.1} parent=1 // pred_check
      _
    $region15: #{tpu_custom_call.1} parent=1 // pred_check_branch
      %46 = sbr.rel (0) target = $region17
    $region16: #{tpu_custom_call.1} parent=1 // pred_region
      %47 = dma.done [#allocation4], 128
    $region17: #{tpu_custom_call.1} parent=1 // pred_fallthru
      _
    %48 = vsyncpa [#allocation3], 1
    %49 = vsyncpa [#allocation4], 1

</llo_original>
